<compile_context>
chip_gen: v7x
topology: tpu7x:2x2x1
jax: 0.10.0
libtpu: 0.0.40
codegen_flags: <defaults>
</compile_context>

<pallas_src>
import math
from functools import partial

import numpy as np
import jax
import jax.numpy as jnp
from jax.experimental import pallas as pl
from jax.experimental.pallas import tpu as pltpu


# ----------------------------------------------------------------------------
# Host-side target construction (glue; mirrors the PyTorch build_targets loop).
# TODO(synk): build_targets is inherently data-dependent scalar control flow;
#             it stays on host (numpy) rather than inside the Pallas kernel.
# ----------------------------------------------------------------------------
def bbox_iou(box1, box2, x1y1x2y2=True):
    if x1y1x2y2:
        mx, Mx = min(box1[0], box2[0]), max(box1[2], box2[2])
        my, My = min(box1[1], box2[1]), max(box1[3], box2[3])
        w1, h1 = box1[2] - box1[0], box1[3] - box1[1]
        w2, h2 = box2[2] - box2[0], box2[3] - box2[1]
    else:
        mx = min(box1[0] - box1[2] / 2.0, box2[0] - box2[2] / 2.0)
        Mx = max(box1[0] + box1[2] / 2.0, box2[0] + box2[2] / 2.0)
        my = min(box1[1] - box1[3] / 2.0, box2[1] - box2[3] / 2.0)
        My = max(box1[1] + box1[3] / 2.0, box2[1] + box2[3] / 2.0)
        w1, h1 = box1[2], box1[3]
        w2, h2 = box2[2], box2[3]
    uw, uh = Mx - mx, My - my
    cw, ch = w1 + w2 - uw, h1 + h2 - uh
    if cw <= 0 or ch <= 0:
        return 0.0
    area1, area2 = w1 * h1, w2 * h2
    carea = cw * ch
    uarea = area1 + area2 - carea
    return carea / uarea


def build_targets(target, anchors, num_anchors, nH, nW):
    nB = target.shape[0]
    nA = num_anchors
    anchor_step = len(anchors) // num_anchors
    mask = np.zeros((nB, nA, nH, nW), np.float32)
    tx = np.zeros((nB, nA, nH, nW), np.float32)
    ty = np.zeros((nB, nA, nH, nW), np.float32)
    tw = np.zeros((nB, nA, nH, nW), np.float32)
    th = np.zeros((nB, nA, nH, nW), np.float32)
    tconf = np.zeros((nB, nA, nH, nW), np.float32)
    tcls = np.zeros((nB, nA, nH, nW), np.float32)
    nGT = 0
    for b in range(nB):
        for t in range(50):
            if target[b][t * 5 + 1] == 0:
                break
            nGT += 1
            best_iou, best_n = 0.0, -1
            i = int(target[b][t * 5 + 1] * nW)
            j = int(target[b][t * 5 + 2] * nH)
            w = target[b][t * 5 + 3] * nW
            h = target[b][t * 5 + 4] * nH
            gt_box = [0, 0, w, h]
            for n in range(nA):
                anchor_box = [0, 0, anchors[anchor_step * n], anchors[anchor_step * n + 1]]
                iou = bbox_iou(anchor_box, gt_box, x1y1x2y2=False)
                if iou > best_iou:
                    best_iou, best_n = iou, n
            mask[b][best_n][j][i] = 1
            tx[b][best_n][j][i] = target[b][t * 5 + 1] * nW - i
            ty[b][best_n][j][i] = target[b][t * 5 + 2] * nH - j
            tw[b][best_n][j][i] = math.log(w / anchors[anchor_step * best_n])
            th[b][best_n][j][i] = math.log(h / anchors[anchor_step * best_n + 1])
            tconf[b][best_n][j][i] = best_iou
            tcls[b][best_n][j][i] = target[b][t * 5]
    return nGT, mask, tx, ty, tw, th, tconf, tcls


def _round_up(x, m):
    return (x + m - 1) // m * m


# ----------------------------------------------------------------------------
# Pallas kernel: sum over all cells of sigmoid(conf)^2.
# ----------------------------------------------------------------------------
_SLAB = 64  # rows per inner slab: 8 f32 vregs of load + small intermediates


def _make_conf_ssq_kernel(TS):
    n_slabs = TS // _SLAB

    def kernel(conf_ref, out_ref):
        @pl.when(pl.program_id(1) == 0)
        def _init():
            out_ref[...] = jnp.zeros_like(out_ref)

        def body(s, acc):
            start = pl.multiple_of(s * _SLAB, _SLAB)
            c = conf_ref[pl.ds(start, _SLAB), :]          # (64, 128) slab
            sc = jax.nn.sigmoid(c)
            sq = sc * sc
            # (64,128) -> (8,128) partial reduce: pure VPU adds.
            return acc + jnp.sum(sq.reshape(_SLAB // 8, 8, 128), axis=0)

        acc = jax.lax.fori_loop(0, n_slabs, body,
                                jnp.zeros((8, 128), jnp.float32), unroll=True)
        out_ref[...] += acc

    return kernel


def region_conf_ssq_pallas(conf_flat, *, ts_max=1024, num_splits=None):
    """conf_flat: (N,) f32 conf logits. Returns scalar sum(sigmoid(conf)^2)."""
    n_cells = conf_flat.shape[0]
    R = max(1, -(-n_cells // 128))                 # sublane rows of real data

    if num_splits is None:
        # 2-way leading split only helps on v7x (2 TensorCores); it is a
        # harmless sequential loop on v5e/v6e.  Only split when both halves
        # get at least a full slab of real data (no pure-padding tiles).
        num_splits = 2 if R >= 2 * _SLAB else 1

    # Tile sizing: large tiles (up to ts_max rows) with minimal padding.
    TS0 = min(ts_max, _round_up(-(-R // num_splits), _SLAB))
    tiles_per_split = -(-(-(-R // num_splits)) // TS0)
    TS = min(ts_max, _round_up(-(-R // (num_splits * tiles_per_split)), _SLAB))
    R_pad = num_splits * tiles_per_split * TS
    n_pad = R_pad * 128 - n_cells

    # Pad conf with a large negative value: sigmoid(pad)^2 ~ 1e-26, so no
    # in-kernel validity mask is needed.
    conf = jnp.pad(conf_flat.astype(jnp.float32), (0, n_pad),
                   constant_values=-30.0).reshape(R_pad, 128)

    kernel = _make_conf_ssq_kernel(TS)

    out = pl.pallas_call(
        kernel,
        out_shape=jax.ShapeDtypeStruct((num_splits * 8, 128), jnp.float32),
        grid_spec=pltpu.PrefetchScalarGridSpec(
            num_scalar_prefetch=0,
            grid=(num_splits, tiles_per_split),
            in_specs=[pl.BlockSpec((TS, 128),
                                   lambda p, i: (p * tiles_per_split + i, 0))],
            out_specs=pl.BlockSpec((8, 128), lambda p, i: (p, 0)),
        ),
        compiler_params=pltpu.CompilerParams(
            dimension_semantics=("parallel", "arbitrary"),
        ),
    )(conf)

    # Final cross-sublane/cross-lane reduction: once, in plain JAX (fused by jit).
    return jnp.sum(out)


# ----------------------------------------------------------------------------
# Fully jit-fused forward: conf slice + pad + kernel + masked-cell gather terms.
# ----------------------------------------------------------------------------
@partial(jax.jit, static_argnames=("nA", "nC", "coord_scale", "noobject_scale",
                                   "object_scale", "class_scale"))
def _region_loss_fwd(output, b_idx, a_idx, j_idx, i_idx,
                     t_x, t_y, t_w, t_h, t_conf, labels, inv_denom,
                     *, nA, nC, coord_scale, noobject_scale,
                     object_scale, class_scale):
    nB = output.shape[0]
    nH, nW = output.shape[2], output.shape[3]
    N = nB * nA * nH * nW
    out5 = output.reshape(nB, nA, 5 + nC, nH, nW)

    # ---- dense part: only the conf channel goes through the Pallas kernel ----
    conf_flat = out5[:, :, 4].reshape(-1)
    conf_ssq = region_conf_ssq_pallas(conf_flat)

    noobj_sq = noobject_scale * noobject_scale
    obj_sq = object_scale * object_scale
    loss_conf = noobj_sq * conf_ssq

    # ---- sparse part: the <=50*nB cells where mask==1 (plain-JAX gather) ----
    n_masked = b_idx.shape[0]
    loss_coord = jnp.float32(0.0)
    # class CE of the reference: rows with mask==0 have zeroed logits and
    # label 0 -> each contributes exactly log(nC) (exact because mask in {0,1}).
    loss_cls = jnp.float32(math.log(nC)) * (N - n_masked)

    if n_masked > 0:                               # trace-time branch
        cell = out5[b_idx, a_idx, :, j_idx, i_idx]  # (n_masked, 5+nC)
        xs = jax.nn.sigmoid(cell[:, 0])
        ys = jax.nn.sigmoid(cell[:, 1])
        ws = cell[:, 2]
        hs = cell[:, 3]
        cs = jax.nn.sigmoid(cell[:, 4])

        # coord_scale is uniform across x/y/w/h -> fuse the four terms.
        loss_coord = jnp.sum((xs - t_x) ** 2 + (ys - t_y) ** 2
                             + (ws - t_w) ** 2 + (hs - t_h) ** 2)

        # conf correction: at mask==1 cells replace noobj^2*cs^2 (already in
        # the dense sum) by obj^2*(cs - tconf)^2.
        loss_conf = loss_conf + jnp.sum(obj_sq * (cs - t_conf) ** 2
                                        - noobj_sq * cs * cs)

        cls_logits = cell[:, 5:]
        zmax = jnp.max(cls_logits, axis=-1, keepdims=True)
        lse = zmax[:, 0] + jnp.log(jnp.sum(jnp.exp(cls_logits - zmax), axis=-1))
        picked = jnp.take_along_axis(cls_logits, labels[:, None], axis=-1)[:, 0]
        loss_cls = loss_cls + jnp.sum(lse - picked)

    loss = (coord_scale * loss_coord + loss_conf + class_scale * loss_cls) * inv_denom
    return loss


# ----------------------------------------------------------------------------
# Full RegionLoss forward (glue around the kernel).
# ----------------------------------------------------------------------------
class RegionLossPallas:
    def __init__(self, num_classes=0, anchors=(), num_anchors=1):
        self.num_classes = num_classes
        self.anchors = list(anchors)
        self.num_anchors = num_anchors
        self.coord_scale = 1.0
        self.noobject_scale = 1.0
        self.object_scale = 5.0
        self.class_scale = 1.0

    def __call__(self, output, target_np):
        output = jnp.asarray(output)
        nB, _, nH, nW = output.shape
        nA, nC = self.num_anchors, self.num_classes

        nGT, mask, tx, ty, tw, th, tconf, tcls = build_targets(
            np.asarray(target_np), self.anchors, nA, nH, nW)

        # The analytic log(nC) fold and the mask*(a-b)^2 factorisation require
        # mask strictly in {0,1} (true for this build_targets).
        assert set(np.unique(mask)).issubset({0.0, 1.0})

        sel = mask > 0
        b_idx, a_idx, j_idx, i_idx = np.nonzero(sel)

        # Per-masked-cell targets (tiny: <= 50*nB entries).
        t_x = jnp.asarray(tx[sel])
        t_y = jnp.asarray(ty[sel])
        t_w = jnp.asarray(tw[sel])
        t_h = jnp.asarray(th[sel])
        t_conf = jnp.asarray(tconf[sel])
        labels = jnp.asarray(tcls[sel].astype(np.int32))

        # TODO(synk): nGT==0 guard (denom=1.0) intentionally diverges from the
        #             PyTorch reference, which would divide by zero.
        denom = float(nGT) if nGT > 0 else 1.0
        inv_denom = jnp.asarray(1.0 / denom, dtype=jnp.float32)

        return _region_loss_fwd(
            output,
            jnp.asarray(b_idx), jnp.asarray(a_idx),
            jnp.asarray(j_idx), jnp.asarray(i_idx),
            t_x, t_y, t_w, t_h, t_conf, labels, inv_denom,
            nA=nA, nC=nC,
            coord_scale=float(self.coord_scale),
            noobject_scale=float(self.noobject_scale),
            object_scale=float(self.object_scale),
            class_scale=float(self.class_scale))


# ----------------------------------------------------------------------------
# Pure-numpy reference of the forward (same math) for a correctness check.
# ----------------------------------------------------------------------------
def region_loss_ref(output_np, target_np, anchors, nA, nC,
                    coord_scale=1.0, noobject_scale=1.0, object_scale=5.0, class_scale=1.0):
    nB, _, nH, nW = output_np.shape
    N = nB * nA * nH * nW
    nGT, mask, tx, ty, tw, th, tconf, tcls = build_targets(target_np, anchors, nA, nH, nW)
    scale_mask = noobject_scale * (1.0 - mask) + object_scale * mask
    out5 = output_np.reshape(nB, nA, 5 + nC, nH, nW).astype(np.float64)

    def sig(v):
        return 1.0 / (1.0 + np.exp(-v))

    x, y = sig(out5[:, :, 0]), sig(out5[:, :, 1])
    w, h = out5[:, :, 2], out5[:, :, 3]
    conf = sig(out5[:, :, 4])
    cls = np.transpose(out5[:, :, 5:], (0, 1, 3, 4, 2)).reshape(N, nC)  # rows = (b,a,j,i)

    loss_x = coord_scale * np.sum((x * mask - tx * mask) ** 2) / nGT
    loss_y = coord_scale * np.sum((y * mask - ty * mask) ** 2) / nGT
    loss_w = coord_scale * np.sum((w * mask - tw * mask) ** 2) / nGT
    loss_h = coord_scale * np.sum((h * mask - th * mask) ** 2) / nGT
    loss_conf = np.sum((conf * scale_mask - tconf * scale_mask) ** 2) / nGT

    z = cls * mask.reshape(-1)[:, None]
    zmax = np.max(z, axis=1, keepdims=True)
    lse = (zmax + np.log(np.sum(np.exp(z - zmax), axis=1, keepdims=True)))[:, 0]
    labels = tcls.reshape(-1).astype(np.int64)
    picked = z[np.arange(N), labels]
    loss_cls = class_scale * np.sum(lse - picked) / nGT
    return loss_x + loss_y + loss_w + loss_h + loss_conf + loss_cls


if __name__ == "__main__":
    # small config: nB=2, nA=5 anchors (anchor_step=2), nC=4 classes, 8x8 grid
    nB, nA, nC, nH, nW = 2, 5, 4, 8, 8
    anchors = [1.0, 1.5, 2.0, 2.5, 3.0, 3.5, 4.0, 4.5, 5.0, 5.5]

    key = jax.random.PRNGKey(0)
    output = jax.random.normal(key, (nB, nA * (5 + nC), nH, nW), dtype=jnp.float32)

    # deterministic synthetic targets: [cls, x, y, w, h] * 50 per batch element
    target = np.zeros((nB, 250), np.float32)
    target[0, 0:5] = [1.0, 0.30, 0.40, 0.25, 0.30]
    target[0, 5:10] = [3.0, 0.70, 0.60, 0.50, 0.40]
    target[1, 0:5] = [2.0, 0.50, 0.20, 0.35, 0.60]

    loss_fn = RegionLossPallas(num_classes=nC, anchors=anchors, num_anchors=nA)
    loss = jax.block_until_ready(loss_fn(output, target))

    ref = region_loss_ref(np.asarray(output), target, anchors, nA, nC)
    assert np.allclose(float(loss), ref, rtol=2e-3, atol=2e-3), (float(loss), ref)
    print("KERNEL_OK")
</pallas_src>

<mosaic_0001>
module attributes {stable_mosaic.version = 11 : i64} {
  func.func @kernel(%arg0: i32, %arg1: i32, %arg2: memref<64x128xf32, #tpu.memory_space<vmem>>, %arg3: memref<8x128xf32, #tpu.memory_space<vmem>>) attributes {dimension_semantics = [#tpu.dimension_semantics<parallel>, #tpu.dimension_semantics<arbitrary>], iteration_bounds = array<i64: 1, 1>, scalar_prefetch = 0 : i64, scratch_operands = 0 : i64, tpu.core_type = #tpu.core_type<tc>, window_params = [{transform_indices = @transform_0, window_bounds = array<i64: 64, 128>}, {transform_indices = @transform_1, window_bounds = array<i64: 8, 128>}]} {
    %c0_i32 = arith.constant 0 : i32
    %0 = arith.cmpi eq, %arg1, %c0_i32 : i32
    %1 = arith.extui %0 : i1 to i32
    %c0_i32_0 = arith.constant 0 : i32
    %2 = arith.cmpi ne, %1, %c0_i32_0 : i32
    scf.if %2 {
      %cst_8 = arith.constant 0.000000e+00 : f32
      %20 = vector.broadcast %cst_8 : f32 to vector<8x128xf32>
      %c0_9 = arith.constant 0 : index
      %c0_10 = arith.constant 0 : index
      %21 = vector.load %arg3[%c0_9, %c0_10] : memref<8x128xf32, #tpu.memory_space<vmem>>, vector<8x128xf32>
      tpu.vector_store %arg3[%c0_9, %c0_10], %20 {strides = array<i32>} : memref<8x128xf32, #tpu.memory_space<vmem>>, vector<8x128xf32>,
    } else {
    }
    %cst = arith.constant 0.000000e+00 : f32
    %3 = vector.broadcast %cst : f32 to vector<8x128xf32>
    %c0_i32_1 = arith.constant 0 : i32
    %c64_i32 = arith.constant 64 : i32
    %4 = arith.muli %c0_i32_1, %c64_i32 : i32
    %5 = tpu.assume_multiple %4, 64 : i32
    %6 = arith.index_cast %5 : i32 to index
    %c0 = arith.constant 0 : index
    %7 = vector.load %arg2[%6, %c0] : memref<64x128xf32, #tpu.memory_space<vmem>>, vector<64x128xf32>
    %8 = arith.negf %7 : vector<64x128xf32>
    %9 = math.exp %8 : vector<64x128xf32>
    %cst_2 = arith.constant 1.000000e+00 : f32
    %10 = vector.broadcast %cst_2 : f32 to vector<64x128xf32>
    %11 = arith.addf %10, %9 : vector<64x128xf32>
    %12 = arith.divf %10, %11 : vector<64x128xf32>
    %13 = arith.mulf %12, %12 : vector<64x128xf32>
    %14 = vector.shape_cast %13 : vector<64x128xf32> to vector<8x8x128xf32>
    %cst_3 = arith.constant dense<0.000000e+00> : vector<8x128xf32>
    %15 = vector.multi_reduction <add>, %14, %cst_3 [0] : vector<8x8x128xf32> to vector<8x128xf32>
    %16 = arith.addf %3, %15 : vector<8x128xf32>
    %c1_i32 = arith.constant 1 : i32
    %c0_4 = arith.constant 0 : index
    %c0_5 = arith.constant 0 : index
    %17 = vector.load %arg3[%c0_4, %c0_5] : memref<8x128xf32, #tpu.memory_space<vmem>>, vector<8x128xf32>
    %18 = arith.addf %17, %16 : vector<8x128xf32>
    %c0_6 = arith.constant 0 : index
    %c0_7 = arith.constant 0 : index
    %19 = vector.load %arg3[%c0_6, %c0_7] : memref<8x128xf32, #tpu.memory_space<vmem>>, vector<8x128xf32>
    tpu.vector_store %arg3[%c0_6, %c0_7], %18 {strides = array<i32>} : memref<8x128xf32, #tpu.memory_space<vmem>>, vector<8x128xf32>,
    return
  }
  func.func @transform_0(%arg0: i32, %arg1: i32) -> (i32, i32) {
    %c1_i32 = arith.constant 1 : i32
    %0 = arith.muli %arg0, %c1_i32 : i32
    %1 = arith.addi %0, %arg1 : i32
    %c0_i32 = arith.constant 0 : i32
    %c0_i32_0 = arith.constant 0 : i32
    return %1, %c0_i32 : i32, i32
  }
  func.func @transform_1(%arg0: i32, %arg1: i32) -> (i32, i32) {
    %c0_i32 = arith.constant 0 : i32
    %c0_i32_0 = arith.constant 0 : i32
    return %arg0, %c0_i32 : i32, i32
  }
}

</mosaic_0001>

<llo_original>
// kernel: squeeze.7
$region0: #{squeeze.7}
  %s0 = inlined_call_operand.vmem [shape: f32[2,5,1,8,8], index: 0, kind: input, shape index: {}]
  %s1 = inlined_call_operand.vmem [shape: f32[640], index: 1, kind: output, shape index: {}]
  %s2 = smov 3
  %v3 = vld [vmem:[%s0] ss:$16 sm:%s2]
  %s4 = smov 12
  %v5 = vld [vmem:[%s0] ss:$16 sm:%s4]
  %vm6 = vcmask 1043458
  %v7 = vsel %vm6, %v5, %v3
  %s8 = scalar_lea.vmem %s0, 60
  %v9 = vld [vmem:[%s8] sm:$0x10]
  %vm10 = vcmask 1044484
  %v11 = vsel %vm10, %v9, %v7
  %vm12 = vcmask 64512
  %13 = vst.msk [vmem:[%s1] sm:$0x1f] %vm12, %v11
  %s14 = scalar_lea.vmem %s0, 15
  %s15 = smov 3
  %v16 = vld [vmem:[%s14] ss:$16 sm:%s15]
  %s17 = scalar_lea.vmem %s0, 15
  %s18 = smov 12
  %v19 = vld [vmem:[%s17] ss:$16 sm:%s18]
  %vm20 = vcmask 1043458
  %v21 = vsel %vm20, %v19, %v16
  %s22 = scalar_lea.vmem %s0, 75
  %v23 = vld [vmem:[%s22] sm:$0x10]
  %vm24 = vcmask 1044484
  %v25 = vsel %vm24, %v23, %v21
  %26 = vrot.lane.b32.xlu0 %v25, 120
  %v27 = vpop.permute.xlu0 %26
  %vm28 = vcmask 1048512
  %29 = vst.msk [vmem:[%s1] sm:$0x1f] %vm28, %v27
  %s30 = scalar_lea.vmem %s0, 14
  %s31 = smov 3
  %v32 = vld [vmem:[%s30] ss:$16 sm:%s31]
  %s33 = scalar_lea.vmem %s0, 14
  %s34 = smov 12
  %v35 = vld [vmem:[%s33] ss:$16 sm:%s34]
  %vm36 = vcmask 1043458
  %v37 = vsel %vm36, %v35, %v32
  %s38 = scalar_lea.vmem %s0, 74
  %v39 = vld [vmem:[%s38] sm:$0x10]
  %vm40 = vcmask 1044484
  %v41 = vsel %vm40, %v39, %v37
  %42 = vrot.lane.b32.xlu0 %v41, 112
  %v43 = vpop.permute.xlu0 %42
  %vm44 = vcmask 982912
  %45 = vst.msk [vmem:[%s1] sm:$0x1f] %vm44, %v43
  %s46 = scalar_lea.vmem %s0, 13
  %s47 = smov 3
  %v48 = vld [vmem:[%s46] ss:$16 sm:%s47]
  %s49 = scalar_lea.vmem %s0, 13
  %s50 = smov 12
  %v51 = vld [vmem:[%s49] ss:$16 sm:%s50]
  %vm52 = vcmask 1043458
  %v53 = vsel %vm52, %v51, %v48
  %s54 = scalar_lea.vmem %s0, 73
  %v55 = vld [vmem:[%s54] sm:$0x10]
  %vm56 = vcmask 1044484
  %v57 = vsel %vm56, %v55, %v53
  %58 = vrot.lane.b32.xlu0 %v57, 104
  %v59 = vpop.permute.xlu0 %58
  %vm60 = vcmask 917312
  %61 = vst.msk [vmem:[%s1] sm:$0x1f] %vm60, %v59
  %s62 = scalar_lea.vmem %s0, 12
  %s63 = smov 3
  %v64 = vld [vmem:[%s62] ss:$16 sm:%s63]
  %s65 = scalar_lea.vmem %s0, 12
  %s66 = smov 12
  %v67 = vld [vmem:[%s65] ss:$16 sm:%s66]
  %vm68 = vcmask 1043458
  %v69 = vsel %vm68, %v67, %v64
  %s70 = scalar_lea.vmem %s0, 72
  %v71 = vld [vmem:[%s70] sm:$0x10]
  %vm72 = vcmask 1044484
  %v73 = vsel %vm72, %v71, %v69
  %74 = vrot.lane.b32.xlu0 %v73, 96
  %v75 = vpop.permute.xlu0 %74
  %vm76 = vcmask 851712
  %77 = vst.msk [vmem:[%s1] sm:$0x1f] %vm76, %v75
  %s78 = scalar_lea.vmem %s0, 11
  %s79 = smov 3
  %v80 = vld [vmem:[%s78] ss:$16 sm:%s79]
  %s81 = scalar_lea.vmem %s0, 11
  %s82 = smov 12
  %v83 = vld [vmem:[%s81] ss:$16 sm:%s82]
  %vm84 = vcmask 1043458
  %v85 = vsel %vm84, %v83, %v80
  %s86 = scalar_lea.vmem %s0, 71
  %v87 = vld [vmem:[%s86] sm:$0x10]
  %vm88 = vcmask 1044484
  %v89 = vsel %vm88, %v87, %v85
  %90 = vrot.lane.b32.xlu0 %v89, 88
  %v91 = vpop.permute.xlu0 %90
  %vm92 = vcmask 786112
  %93 = vst.msk [vmem:[%s1] sm:$0x1f] %vm92, %v91
  %s94 = scalar_lea.vmem %s0, 10
  %s95 = smov 3
  %v96 = vld [vmem:[%s94] ss:$16 sm:%s95]
  %s97 = scalar_lea.vmem %s0, 10
  %s98 = smov 12
  %v99 = vld [vmem:[%s97] ss:$16 sm:%s98]
  %vm100 = vcmask 1043458
  %v101 = vsel %vm100, %v99, %v96
  %s102 = scalar_lea.vmem %s0, 70
  %v103 = vld [vmem:[%s102] sm:$0x10]
  %vm104 = vcmask 1044484
  %v105 = vsel %vm104, %v103, %v101
  %106 = vrot.lane.b32.xlu0 %v105, 80
  %v107 = vpop.permute.xlu0 %106
  %vm108 = vcmask 720512
  %109 = vst.msk [vmem:[%s1] sm:$0x1f] %vm108, %v107
  %s110 = scalar_lea.vmem %s0, 9
  %s111 = smov 3
  %v112 = vld [vmem:[%s110] ss:$16 sm:%s111]
  %s113 = scalar_lea.vmem %s0, 9
  %s114 = smov 12
  %v115 = vld [vmem:[%s113] ss:$16 sm:%s114]
  %vm116 = vcmask 1043458
  %v117 = vsel %vm116, %v115, %v112
  %s118 = scalar_lea.vmem %s0, 69
  %v119 = vld [vmem:[%s118] sm:$0x10]
  %vm120 = vcmask 1044484
  %v121 = vsel %vm120, %v119, %v117
  %122 = vrot.lane.b32.xlu0 %v121, 72
  %v123 = vpop.permute.xlu0 %122
  %vm124 = vcmask 654912
  %125 = vst.msk [vmem:[%s1] sm:$0x1f] %vm124, %v123
  %s126 = scalar_lea.vmem %s0, 8
  %s127 = smov 3
  %v128 = vld [vmem:[%s126] ss:$16 sm:%s127]
  %s129 = scalar_lea.vmem %s0, 8
  %s130 = smov 12
  %v131 = vld [vmem:[%s129] ss:$16 sm:%s130]
  %vm132 = vcmask 1043458
  %v133 = vsel %vm132, %v131, %v128
  %s134 = scalar_lea.vmem %s0, 68
  %v135 = vld [vmem:[%s134] sm:$0x10]
  %vm136 = vcmask 1044484
  %v137 = vsel %vm136, %v135, %v133
  %138 = vrot.lane.b32.xlu0 %v137, 64
  %v139 = vpop.permute.xlu0 %138
  %vm140 = vcmask 589312
  %141 = vst.msk [vmem:[%s1] sm:$0x1f] %vm140, %v139
  %s142 = scalar_lea.vmem %s0, 7
  %s143 = smov 3
  %v144 = vld [vmem:[%s142] ss:$16 sm:%s143]
  %s145 = scalar_lea.vmem %s0, 7
  %s146 = smov 12
  %v147 = vld [vmem:[%s145] ss:$16 sm:%s146]
  %vm148 = vcmask 1043458
  %v149 = vsel %vm148, %v147, %v144
  %s150 = scalar_lea.vmem %s0, 67
  %v151 = vld [vmem:[%s150] sm:$0x10]
  %vm152 = vcmask 1044484
  %v153 = vsel %vm152, %v151, %v149
  %154 = vrot.lane.b32.xlu0 %v153, 56
  %v155 = vpop.permute.xlu0 %154
  %vm156 = vcmask 523712
  %157 = vst.msk [vmem:[%s1] sm:$0x1f] %vm156, %v155
  %s158 = scalar_lea.vmem %s0, 6
  %s159 = smov 3
  %v160 = vld [vmem:[%s158] ss:$16 sm:%s159]
  %s161 = scalar_lea.vmem %s0, 6
  %s162 = smov 12
  %v163 = vld [vmem:[%s161] ss:$16 sm:%s162]
  %vm164 = vcmask 1043458
  %v165 = vsel %vm164, %v163, %v160
  %s166 = scalar_lea.vmem %s0, 66
  %v167 = vld [vmem:[%s166] sm:$0x10]
  %vm168 = vcmask 1044484
  %v169 = vsel %vm168, %v167, %v165
  %170 = vrot.lane.b32.xlu0 %v169, 48
  %v171 = vpop.permute.xlu0 %170
  %vm172 = vcmask 458112
  %173 = vst.msk [vmem:[%s1] sm:$0x1f] %vm172, %v171
  %s174 = scalar_lea.vmem %s0, 5
  %s175 = smov 3
  %v176 = vld [vmem:[%s174] ss:$16 sm:%s175]
  %s177 = scalar_lea.vmem %s0, 5
  %s178 = smov 12
  %v179 = vld [vmem:[%s177] ss:$16 sm:%s178]
  %vm180 = vcmask 1043458
  %v181 = vsel %vm180, %v179, %v176
  %s182 = scalar_lea.vmem %s0, 65
  %v183 = vld [vmem:[%s182] sm:$0x10]
  %vm184 = vcmask 1044484
  %v185 = vsel %vm184, %v183, %v181
  %186 = vrot.lane.b32.xlu0 %v185, 40
  %v187 = vpop.permute.xlu0 %186
  %vm188 = vcmask 392512
  %189 = vst.msk [vmem:[%s1] sm:$0x1f] %vm188, %v187
  %s190 = scalar_lea.vmem %s0, 4
  %s191 = smov 3
  %v192 = vld [vmem:[%s190] ss:$16 sm:%s191]
  %s193 = scalar_lea.vmem %s0, 4
  %s194 = smov 12
  %v195 = vld [vmem:[%s193] ss:$16 sm:%s194]
  %vm196 = vcmask 1043458
  %v197 = vsel %vm196, %v195, %v192
  %s198 = scalar_lea.vmem %s0, 64
  %v199 = vld [vmem:[%s198] sm:$0x10]
  %vm200 = vcmask 1044484
  %v201 = vsel %vm200, %v199, %v197
  %202 = vrot.lane.b32.xlu0 %v201, 32
  %v203 = vpop.permute.xlu0 %202
  %vm204 = vcmask 326912
  %205 = vst.msk [vmem:[%s1] sm:$0x1f] %vm204, %v203
  %s206 = scalar_lea.vmem %s0, 3
  %s207 = smov 3
  %v208 = vld [vmem:[%s206] ss:$16 sm:%s207]
  %s209 = scalar_lea.vmem %s0, 3
  %s210 = smov 12
  %v211 = vld [vmem:[%s209] ss:$16 sm:%s210]
  %vm212 = vcmask 1043458
  %v213 = vsel %vm212, %v211, %v208
  %s214 = scalar_lea.vmem %s0, 63
  %v215 = vld [vmem:[%s214] sm:$0x10]
  %vm216 = vcmask 1044484
  %v217 = vsel %vm216, %v215, %v213
  %218 = vrot.lane.b32.xlu0 %v217, 24
  %v219 = vpop.permute.xlu0 %218
  %vm220 = vcmask 261312
  %221 = vst.msk [vmem:[%s1] sm:$0x1f] %vm220, %v219
  %s222 = scalar_lea.vmem %s0, 2
  %s223 = smov 3
  %v224 = vld [vmem:[%s222] ss:$16 sm:%s223]
  %s225 = scalar_lea.vmem %s0, 2
  %s226 = smov 12
  %v227 = vld [vmem:[%s225] ss:$16 sm:%s226]
  %vm228 = vcmask 1043458
  %v229 = vsel %vm228, %v227, %v224
  %s230 = scalar_lea.vmem %s0, 62
  %v231 = vld [vmem:[%s230] sm:$0x10]
  %vm232 = vcmask 1044484
  %v233 = vsel %vm232, %v231, %v229
  %234 = vrot.lane.b32.xlu0 %v233, 16
  %v235 = vpop.permute.xlu0 %234
  %vm236 = vcmask 195712
  %237 = vst.msk [vmem:[%s1] sm:$0x1f] %vm236, %v235
  %s238 = scalar_lea.vmem %s0, 1
  %s239 = smov 3
  %v240 = vld [vmem:[%s238] ss:$16 sm:%s239]
  %s241 = scalar_lea.vmem %s0, 1
  %s242 = smov 12
  %v243 = vld [vmem:[%s241] ss:$16 sm:%s242]
  %vm244 = vcmask 1043458
  %v245 = vsel %vm244, %v243, %v240
  %s246 = scalar_lea.vmem %s0, 61
  %v247 = vld [vmem:[%s246] sm:$0x10]
  %vm248 = vcmask 1044484
  %v249 = vsel %vm248, %v247, %v245
  %250 = vrot.lane.b32.xlu0 %v249, 8
  %v251 = vpop.permute.xlu0 %250
  %vm252 = vcmask 130112
  %253 = vst.msk [vmem:[%s1] sm:$0x1f] %vm252, %v251

// kernel: _region_loss_fwd.1
$region0: #{_region_loss_fwd.1}
  #allocation0 [shape = 'u32[]', space=smem, size = 0x4, offset = 0x4, fixed_abs, tag = 'smem constant byte address 0x4 - core index']
  #allocation1 [shape = 'u32[144,128]{1,0:T(1,128)}', space=vmem, size = 0x12000, scoped, tag = 'internal scratch']
  %s0 = inlined_call_operand.vmem [shape: f32[64,128], index: 0, kind: input, shape index: {}]
  %s1 = inlined_call_operand.vmem [shape: f32[8,128], index: 1, kind: output, shape index: {}]
  %s2 = sld [smem:[#allocation0]]
  $region18: #{_region_loss_fwd.1} parent=0
    _
  %s4 = ssub.s32 1, %s2
  %s5 = scalar_select 0, %s4, %s2
  // Predicated region
  $region2: #{_region_loss_fwd.1} parent=0 // pred_check
    _
  $region3: #{_region_loss_fwd.1} parent=0 // pred_check_branch
    %7 = sbr.rel (0) target = $region5
  $region4: #{_region_loss_fwd.1} parent=0 // pred_region
    %s8 = sadd.s32 0, 0
    %s9 = smul.u32 8, %s8
    %p10 = scmp.lt.s32.totalorder %s9, 7
    %s11 = scalar_select %p10, %s9, 7
    %s12 = smul.addr %s11, 8
    %s13 = scalar_lea.vmem %s0, %s12
    %s14 = sadd.s32 0, 0
    %s15 = smul.u32 8, %s14
  $region5: #{_region_loss_fwd.1} parent=0 // pred_fallthru
    _
  %s16 = sadd.s32 0, 0
  %s17 = smul.u32 8, %s16
  %p18 = scmp.lt.s32.totalorder %s17, 7
  %s19 = scalar_select %p18, %s17, 7
  %s20 = smul.addr %s19, 8
  %s21 = scalar_lea.vmem %s0, %s20
  %s22 = sadd.s32 0, 0
  %s23 = smul.u32 8, %s22
  %p24 = scmp.lt.s32.totalorder %s23, 7
  %s25 = scalar_select %p24, %s23, 7
  %s26 = smul.addr %s25, 8
  %s27 = scalar_lea.vmem %s0, %s26
  %s28 = sadd.s32 0, 0
  %s29 = smul.u32 8, %s28
  %p30 = scmp.eq.s32.totalorder 0, 0
  // Predicated region
  $region6: #{_region_loss_fwd.1} parent=0 // pred_check
    %p31 = pneg %p30
  $region7: #{_region_loss_fwd.1} parent=0 // pred_check_branch
    %33 = sbr.rel (%p31) target = $region9
  $region8: #{_region_loss_fwd.1} parent=0 // pred_region
    %34 = vst [vmem:[%s1] sm:$0xff] 0.0
  $region9: #{_region_loss_fwd.1} parent=0 // pred_fallthru
    _
  %v35 = vld [vmem:[%s27] sm:$0xff]
  %v36 = vld [vmem:[%s27 + $0x8] sm:$0xff]
  %v37 = vld [vmem:[%s27 + $0x10] sm:$0xff]
  %v38 = vld [vmem:[%s27 + $0x18] sm:$0xff]
  %v39 = vld [vmem:[%s27 + $0x20] sm:$0xff]
  %v40 = vld [vmem:[%s27 + $0x28] sm:$0xff]
  %v41 = vld [vmem:[%s27 + $0x30] sm:$0xff]
  %v42 = vld [vmem:[%s27 + $0x38] sm:$0xff]
  %v43 = vxor.u32 %v35, 2147483648
  %v44 = vxor.u32 %v36, 2147483648
  %v45 = vxor.u32 %v37, 2147483648
  %v46 = vxor.u32 %v38, 2147483648
  %v47 = vxor.u32 %v39, 2147483648
  %v48 = vxor.u32 %v40, 2147483648
  %v49 = vxor.u32 %v41, 2147483648
  %v50 = vxor.u32 %v42, 2147483648
  %v51 = vmul.f32 %v43, 1.442695
  %v52 = vpow.pop %v51
  %v53 = vmul.f32 %v44, 1.442695
  %v54 = vpow.pop %v53
  %v55 = vmul.f32 %v45, 1.442695
  %v56 = vpow.pop %v55
  %v57 = vmul.f32 %v46, 1.442695
  %v58 = vpow.pop %v57
  %v59 = vmul.f32 %v47, 1.442695
  %v60 = vpow.pop %v59
  %v61 = vmul.f32 %v48, 1.442695
  %v62 = vpow.pop %v61
  %v63 = vmul.f32 %v49, 1.442695
  %v64 = vpow.pop %v63
  %v65 = vmul.f32 %v50, 1.442695
  %v66 = vpow.pop %v65
  %v67 = vadd.f32 %v52, 1.0
  %v68 = vadd.f32 %v54, 1.0
  %v69 = vadd.f32 %v56, 1.0
  %v70 = vadd.f32 %v58, 1.0
  %v71 = vadd.f32 %v60, 1.0
  %v72 = vadd.f32 %v62, 1.0
  %v73 = vadd.f32 %v64, 1.0
  %v74 = vadd.f32 %v66, 1.0
  %v75 = vrcp.pop %v67
  %v76 = vmul.f32 1.0, %v75
  %v77 = vrcp.pop %v68
  %v78 = vmul.f32 1.0, %v77
  %v79 = vrcp.pop %v69
  %v80 = vmul.f32 1.0, %v79
  %v81 = vrcp.pop %v70
  %v82 = vmul.f32 1.0, %v81
  %v83 = vrcp.pop %v71
  %v84 = vmul.f32 1.0, %v83
  %v85 = vrcp.pop %v72
  %v86 = vmul.f32 1.0, %v85
  %v87 = vrcp.pop %v73
  %v88 = vmul.f32 1.0, %v87
  %v89 = vrcp.pop %v74
  %v90 = vmul.f32 1.0, %v89
  %v91 = vmul.f32 %v76, %v76
  %v92 = vmul.f32 %v78, %v78
  %v93 = vmul.f32 %v80, %v80
  %v94 = vmul.f32 %v82, %v82
  %v95 = vmul.f32 %v84, %v84
  %v96 = vmul.f32 %v86, %v86
  %v97 = vmul.f32 %v88, %v88
  %v98 = vmul.f32 %v90, %v90
  %v99 = vadd.f32 %v91, %v92
  %v100 = vadd.f32 %v99, %v93
  %v101 = vadd.f32 %v100, %v94
  %v102 = vadd.f32 %v101, %v95
  %v103 = vadd.f32 %v102, %v96
  %v104 = vadd.f32 %v103, %v97
  %v105 = vadd.f32 %v104, %v98
  %v106 = vadd.f32 %v105, 0.0
  %v107 = vld [vmem:[%s1] sm:$0xff]
  %v108 = vadd.f32 %v107, %v106
  %109 = vst [vmem:[%s1] sm:$0xff] %v108
  // Predicated region
  $region10: #{_region_loss_fwd.1} parent=0 // pred_check
    _
  $region11: #{_region_loss_fwd.1} parent=0 // pred_check_branch
    %111 = sbr.rel (0) target = $region13
  $region12: #{_region_loss_fwd.1} parent=0 // pred_region
    _
  $region13: #{_region_loss_fwd.1} parent=0 // pred_fallthru
    _
  // Predicated region
  $region14: #{_region_loss_fwd.1} parent=0 // pred_check
    _
  $region15: #{_region_loss_fwd.1} parent=0 // pred_check_branch
    %113 = sbr.rel (0) target = $region17
  $region16: #{_region_loss_fwd.1} parent=0 // pred_region
    _
  $region17: #{_region_loss_fwd.1} parent=0 // pred_fallthru
    _

</llo_original>
